<compile_context>
chip_gen: v7x
topology: tpu7x:2x2x1
jax: 0.10.0
libtpu: 0.0.40
codegen_flags: <defaults>
</compile_context>

<pallas_src>
import functools
import math

import jax
import jax.numpy as jnp
import numpy as np
from jax.experimental import pallas as pl
from jax.experimental.pallas import tpu as pltpu


def _round_up(x: int, m: int) -> int:
    return (x + m - 1) // m * m


# ----------------------------------------------------------------------------
# Kernel: one batch tile of   out = ReLU(x @ W1 + b1) @ W2 + b2
# ----------------------------------------------------------------------------
def _mlp_kernel(x_ref, w1_ref, b1_ref, w2_ref, b2_ref, out_ref):
    # Hoist bias reads (single broadcast each).
    b1 = b1_ref[...]
    b2 = b2_ref[...]

    # Hidden layer: MXU matmul with f32 accumulation + VPU ReLU (all f32).
    h = jnp.dot(x_ref[...], w1_ref[...], preferred_element_type=jnp.float32) + b1
    h = jnp.maximum(h, 0.0)

    # Output layer; cast activations to the weight dtype (no-op for f32,
    # bf16 feed on the low-precision path). Accumulation stays f32.
    h = h.astype(w2_ref.dtype)
    out = jnp.dot(h, w2_ref[...], preferred_element_type=jnp.float32) + b2
    out_ref[...] = out.astype(out_ref.dtype)


# ----------------------------------------------------------------------------
# One-time parameter prep (hoisted OUT of the per-call forward path)
# ----------------------------------------------------------------------------
def prepare_params(w1, b1, w2, b2, *, use_bf16=False):
    """Pad all feature dims to multiples of 128 and (optionally) cast the
    weight matrices to bf16.  Done once; the returned dict is what
    `network_forward` consumes on every call."""
    w1 = jnp.asarray(w1, jnp.float32)
    w2 = jnp.asarray(w2, jnp.float32)
    b1 = jnp.asarray(b1, jnp.float32).reshape(1, -1)
    b2 = jnp.asarray(b2, jnp.float32).reshape(1, -1)

    in_size, hid = w1.shape
    hid2, out_size = w2.shape
    assert hid == hid2, "w1/w2 hidden dims mismatch"

    in_pad = _round_up(in_size, 128)
    hid_pad = _round_up(hid, 128)
    out_pad = _round_up(out_size, 128)

    w1p = jnp.pad(w1, ((0, in_pad - in_size), (0, hid_pad - hid)))
    b1p = jnp.pad(b1, ((0, 0), (0, hid_pad - hid)))
    w2p = jnp.pad(w2, ((0, hid_pad - hid), (0, out_pad - out_size)))
    b2p = jnp.pad(b2, ((0, 0), (0, out_pad - out_size)))

    wdtype = jnp.bfloat16 if use_bf16 else jnp.float32
    w1p = w1p.astype(wdtype)
    w2p = w2p.astype(wdtype)
    # Biases stay f32 (added after the f32-accumulated dot).

    return {
        "w1": w1p, "b1": b1p, "w2": w2p, "b2": b2p,
        "in_size": in_size, "out_size": out_size, "use_bf16": bool(use_bf16),
    }


def _pick_tile_b(batch: int, row_align: int) -> int:
    """One grid step whenever the padded batch fits the cap (single-TC parts
    gain nothing from splitting); cap at 512 rows so very large batches still
    split into a few 'parallel' steps (shardable across v7x's two TCs).
    Per-tile VMEM at these feature sizes is far below any scoped limit."""
    cap = 512
    tb = _round_up(batch, row_align)
    return tb if tb <= cap else cap


# ----------------------------------------------------------------------------
# Forward
# ----------------------------------------------------------------------------
@functools.partial(jax.jit, static_argnames=("out_size", "use_bf16"))
def _forward_impl(x, w1, b1, w2, b2, *, out_size, use_bf16):
    B, in_size = x.shape
    in_pad, hid_pad = w1.shape
    out_pad = w2.shape[1]

    row_align = 16 if use_bf16 else 8           # bf16 min tile is (16, 128)
    tb = _pick_tile_b(B, row_align)
    b_pad = _round_up(B, tb)

    # Single fused pad: batch rows + input feature columns.
    if b_pad != B or in_pad != in_size:
        x = jnp.pad(x, ((0, b_pad - B), (0, in_pad - in_size)))
    if use_bf16:
        x = x.astype(jnp.bfloat16)

    grid = (b_pad // tb,)
    # "parallel" only matters when there is more than one step to shard.
    sem = ("parallel",) if grid[0] > 1 else ("arbitrary",)

    out = pl.pallas_call(
        _mlp_kernel,
        out_shape=jax.ShapeDtypeStruct((b_pad, out_pad), jnp.float32),
        grid_spec=pltpu.PrefetchScalarGridSpec(
            num_scalar_prefetch=0,
            grid=grid,
            in_specs=[
                pl.BlockSpec((tb, in_pad), lambda i: (i, 0)),       # x tile
                pl.BlockSpec((in_pad, hid_pad), lambda i: (0, 0)),  # W1 (VMEM-resident)
                pl.BlockSpec((1, hid_pad), lambda i: (0, 0)),       # b1
                pl.BlockSpec((hid_pad, out_pad), lambda i: (0, 0)), # W2 (VMEM-resident)
                pl.BlockSpec((1, out_pad), lambda i: (0, 0)),       # b2
            ],
            out_specs=pl.BlockSpec((tb, out_pad), lambda i: (i, 0)),
        ),
        compiler_params=pltpu.CompilerParams(dimension_semantics=sem),
    )(x, w1, b1, w2, b2)

    return out[:B, :out_size]


def network_forward(x, params):
    """x: (B, input_size) f32 -> (B, output_size) f32 Q-values."""
    return _forward_impl(
        x, params["w1"], params["b1"], params["w2"], params["b2"],
        out_size=params["out_size"], use_bf16=params["use_bf16"])


# ----------------------------------------------------------------------------
# Parameter helpers (match torch.nn.Linear defaults; weights stored (in, out))
# ----------------------------------------------------------------------------
def init_params(key, input_size, hidden_size, output_size):
    k1, k2, k3, k4 = jax.random.split(key, 4)
    bound1 = 1.0 / math.sqrt(input_size)
    bound2 = 1.0 / math.sqrt(hidden_size)
    w1 = jax.random.uniform(k1, (input_size, hidden_size), jnp.float32, -bound1, bound1)
    b1 = jax.random.uniform(k2, (1, hidden_size), jnp.float32, -bound1, bound1)
    w2 = jax.random.uniform(k3, (hidden_size, output_size), jnp.float32, -bound2, bound2)
    b2 = jax.random.uniform(k4, (1, output_size), jnp.float32, -bound2, bound2)
    return w1, b1, w2, b2


def noisy_effective_params(w2, b2, sigma_w, sigma_b, eps_w, eps_b):
    """NoisyLinear.forward: W_eff = W + sigma_w*eps_w, b_eff = b + sigma_b*eps_b.
    sigma_w/sigma_b are the (learned) sigma parameters; with PyTorch's init they
    start as constant sigma_init. eps is independent Gaussian (non-factorized),
    exactly as in the reference sample_noise()."""
    return w2 + sigma_w * eps_w, b2 + sigma_b * eps_b


def reference_forward(x, w1, b1, w2, b2):
    h = jnp.maximum(x @ w1 + b1, 0.0)
    return h @ w2 + b2


# ----------------------------------------------------------------------------
# Self-test
# ----------------------------------------------------------------------------
if __name__ == "__main__":
    key = jax.random.PRNGKey(0)

    # --- case 1: small, "nice" shapes (plain Network, noisy=False) ---
    batch, input_size, hidden_size, output_size = 16, 32, 64, 8
    kx, kp, kew, keb = jax.random.split(key, 4)
    x = jax.random.normal(kx, (batch, input_size), jnp.float32)
    w1, b1, w2, b2 = init_params(kp, input_size, hidden_size, output_size)

    params = prepare_params(w1, b1, w2, b2)                 # one-time prep
    out = jax.block_until_ready(network_forward(x, params))
    ref = reference_forward(x, w1, b1, w2, b2)
    np.testing.assert_allclose(np.asarray(out), np.asarray(ref), rtol=1e-5, atol=1e-5)

    # --- case 2: noisy Network after sample_noise(): fold noise into w2/b2 ---
    sigma_init = 0.017
    sigma_w = jnp.full((hidden_size, output_size), sigma_init, jnp.float32)
    sigma_b = jnp.full((1, output_size), sigma_init, jnp.float32)
    eps_w = jax.random.normal(kew, (hidden_size, output_size), jnp.float32)
    eps_b = jax.random.normal(keb, (1, output_size), jnp.float32)
    w2_eff, b2_eff = noisy_effective_params(w2, b2, sigma_w, sigma_b, eps_w, eps_b)
    params_noisy = prepare_params(w1, b1, w2_eff, b2_eff)
    out_n = jax.block_until_ready(network_forward(x, params_noisy))
    ref_n = reference_forward(x, w1, b1, w2_eff, b2_eff)
    np.testing.assert_allclose(np.asarray(out_n), np.asarray(ref_n), rtol=1e-5, atol=1e-5)

    # --- case 3: deep_dialog-like unaligned shapes (exercises all the pads) ---
    b3, i3, h3, o3 = 5, 70, 80, 43
    k1, k2 = jax.random.split(jax.random.PRNGKey(1), 2)
    x3 = jax.random.normal(k1, (b3, i3), jnp.float32)
    p3 = init_params(k2, i3, h3, o3)
    params3 = prepare_params(*p3)
    out3 = jax.block_until_ready(network_forward(x3, params3))
    ref3 = reference_forward(x3, *p3)
    np.testing.assert_allclose(np.asarray(out3), np.asarray(ref3), rtol=1e-5, atol=1e-5)

    # --- case 4: bf16 weight/input path (16-row tiles, f32 accumulation) ---
    params_bf16 = prepare_params(w1, b1, w2, b2, use_bf16=True)
    out_bf = jax.block_until_ready(network_forward(x, params_bf16))
    np.testing.assert_allclose(np.asarray(out_bf), np.asarray(ref), rtol=5e-2, atol=5e-2)

    # TODO(synk): NoisyLinear.sample_noise()/remove_noise() are stateful parameter
    # updates with no per-example compute; they are modeled by regenerating /
    # zeroing eps_w / eps_b and re-running noisy_effective_params + prepare_params
    # in the wrapper, not inside the kernel.

    print("KERNEL_OK")
</pallas_src>

<mosaic_0001>
module attributes {stable_mosaic.version = 11 : i64} {
  func.func @_mlp_kernel(%arg0: i32, %arg1: memref<16x128xf32, #tpu.memory_space<vmem>>, %arg2: memref<128x128xf32, #tpu.memory_space<vmem>>, %arg3: memref<1x128xf32, #tpu.memory_space<vmem>>, %arg4: memref<128x128xf32, #tpu.memory_space<vmem>>, %arg5: memref<1x128xf32, #tpu.memory_space<vmem>>, %arg6: memref<16x128xf32, #tpu.memory_space<vmem>>) attributes {dimension_semantics = [#tpu.dimension_semantics<arbitrary>], iteration_bounds = array<i64: 1>, scalar_prefetch = 0 : i64, scratch_operands = 0 : i64, tpu.core_type = #tpu.core_type<tc>, window_params = [{transform_indices = @transform_0, window_bounds = array<i64: 16, 128>}, {pipeline_mode = #tpu.pipeline_mode<synchronous>, transform_indices = @transform_1, window_bounds = array<i64: 128, 128>}, {pipeline_mode = #tpu.pipeline_mode<synchronous>, transform_indices = @transform_2, window_bounds = array<i64: 1, 128>}, {pipeline_mode = #tpu.pipeline_mode<synchronous>, transform_indices = @transform_3, window_bounds = array<i64: 128, 128>}, {pipeline_mode = #tpu.pipeline_mode<synchronous>, transform_indices = @transform_4, window_bounds = array<i64: 1, 128>}, {transform_indices = @transform_5, window_bounds = array<i64: 16, 128>}]} {
    %c0 = arith.constant 0 : index
    %c0_0 = arith.constant 0 : index
    %0 = vector.load %arg3[%c0, %c0_0] : memref<1x128xf32, #tpu.memory_space<vmem>>, vector<1x128xf32>
    %c0_1 = arith.constant 0 : index
    %c0_2 = arith.constant 0 : index
    %1 = vector.load %arg5[%c0_1, %c0_2] : memref<1x128xf32, #tpu.memory_space<vmem>>, vector<1x128xf32>
    %c0_3 = arith.constant 0 : index
    %c0_4 = arith.constant 0 : index
    %2 = vector.load %arg1[%c0_3, %c0_4] : memref<16x128xf32, #tpu.memory_space<vmem>>, vector<16x128xf32>
    %c0_5 = arith.constant 0 : index
    %c0_6 = arith.constant 0 : index
    %3 = vector.load %arg2[%c0_5, %c0_6] : memref<128x128xf32, #tpu.memory_space<vmem>>, vector<128x128xf32>
    %cst = arith.constant dense<0.000000e+00> : vector<16x128xf32>
    %4 = tpu.matmul %2, %3, %cst {dimension_numbers = #tpu.dot_dimension_numbers<[1], [0], [0], [1], [0, 0, 1, 1], [], []>} : vector<16x128xf32>, vector<128x128xf32>, vector<16x128xf32> -> vector<16x128xf32>
    %5 = vector.broadcast %0 : vector<1x128xf32> to vector<16x128xf32>
    %6 = arith.addf %4, %5 : vector<16x128xf32>
    %cst_7 = arith.constant 0.000000e+00 : f32
    %7 = vector.broadcast %cst_7 : f32 to vector<16x128xf32>
    %8 = arith.maximumf %6, %7 : vector<16x128xf32>
    %c0_8 = arith.constant 0 : index
    %c0_9 = arith.constant 0 : index
    %9 = vector.load %arg4[%c0_8, %c0_9] : memref<128x128xf32, #tpu.memory_space<vmem>>, vector<128x128xf32>
    %cst_10 = arith.constant dense<0.000000e+00> : vector<16x128xf32>
    %10 = tpu.matmul %8, %9, %cst_10 {dimension_numbers = #tpu.dot_dimension_numbers<[1], [0], [0], [1], [0, 0, 1, 1], [], []>} : vector<16x128xf32>, vector<128x128xf32>, vector<16x128xf32> -> vector<16x128xf32>
    %11 = vector.broadcast %1 : vector<1x128xf32> to vector<16x128xf32>
    %12 = arith.addf %10, %11 : vector<16x128xf32>
    %c0_11 = arith.constant 0 : index
    %c0_12 = arith.constant 0 : index
    %13 = vector.load %arg6[%c0_11, %c0_12] : memref<16x128xf32, #tpu.memory_space<vmem>>, vector<16x128xf32>
    tpu.vector_store %arg6[%c0_11, %c0_12], %12 {strides = array<i32>} : memref<16x128xf32, #tpu.memory_space<vmem>>, vector<16x128xf32>,
    return
  }
  func.func @transform_0(%arg0: i32) -> (i32, i32) {
    %c0_i32 = arith.constant 0 : i32
    %c0_i32_0 = arith.constant 0 : i32
    return %arg0, %c0_i32 : i32, i32
  }
  func.func @transform_1(%arg0: i32) -> (i32, i32) {
    %c0_i32 = arith.constant 0 : i32
    %c0_i32_0 = arith.constant 0 : i32
    %c0_i32_1 = arith.constant 0 : i32
    return %c0_i32, %c0_i32_0 : i32, i32
  }
  func.func @transform_2(%arg0: i32) -> (i32, i32) {
    %c0_i32 = arith.constant 0 : i32
    %c0_i32_0 = arith.constant 0 : i32
    %c0_i32_1 = arith.constant 0 : i32
    return %c0_i32, %c0_i32_0 : i32, i32
  }
  func.func @transform_3(%arg0: i32) -> (i32, i32) {
    %c0_i32 = arith.constant 0 : i32
    %c0_i32_0 = arith.constant 0 : i32
    %c0_i32_1 = arith.constant 0 : i32
    return %c0_i32, %c0_i32_0 : i32, i32
  }
  func.func @transform_4(%arg0: i32) -> (i32, i32) {
    %c0_i32 = arith.constant 0 : i32
    %c0_i32_0 = arith.constant 0 : i32
    %c0_i32_1 = arith.constant 0 : i32
    return %c0_i32, %c0_i32_0 : i32, i32
  }
  func.func @transform_5(%arg0: i32) -> (i32, i32) {
    %c0_i32 = arith.constant 0 : i32
    %c0_i32_0 = arith.constant 0 : i32
    return %arg0, %c0_i32 : i32, i32
  }
}

</mosaic_0001>

<llo_original>
// kernel: _forward_impl.1
$region0: #{_forward_impl.1}
  #allocation0 [shape = 'u32[]', space=smem, size = 0x4, offset = 0x4, fixed_abs, tag = 'smem constant byte address 0x4 - core index']
  #allocation1 [shape = 'u32[144,128]{1,0:T(1,128)}', space=vmem, size = 0x12000, scoped, tag = 'internal scratch']
  %s0 = inlined_call_operand.vmem [shape: f32[16,128], index: 0, kind: input, shape index: {}]
  %s1 = inlined_call_operand.hbm [shape: f32[128,128], index: 1, kind: input, shape index: {}]
  %s2 = inlined_call_operand.vmem [shape: f32[1,128], index: 2, kind: input, shape index: {}]
  %s3 = inlined_call_operand.hbm [shape: f32[128,128], index: 3, kind: input, shape index: {}]
  %s4 = inlined_call_operand.vmem [shape: f32[1,128], index: 4, kind: input, shape index: {}]
  %s5 = inlined_call_operand.vmem [shape: f32[16,128], index: 5, kind: output, shape index: {}]
  %s6 = sld [smem:[#allocation0]]
  $region38: #{_forward_impl.1} parent=0
    _
  %s8 = ssub.s32 1, %s6
  %s9 = scalar_select 0, %s8, %s6
  $region1: #{_forward_impl.1} parent=0
    #allocation2 [shape = 'u8[65536]{0}', space=vmem, size = 0x10000, scoped, tag = 'input window, operand 1, single buffered']
    #allocation3 [shape = 's32[1]{0}', space=sflag, size = 0x4, scoped, tag = 'scoped memory for _forward_impl.1']
    #allocation4 [shape = 'u8[65536]{0}', space=vmem, size = 0x10000, scoped, tag = 'input window, operand 3, single buffered']
    #allocation5 [shape = 's32[1]{0}', space=sflag, size = 0x4, scoped, tag = 'scoped memory for _forward_impl.1']
    %10 = vsyncpa [#allocation3], 0
    %11 = vsyncpa [#allocation5], 0
    // Predicated region
    $region2: #{_forward_impl.1} parent=1 // pred_check
      _
    $region3: #{_forward_impl.1} parent=1 // pred_check_branch
      %13 = sbr.rel (0) target = $region5
    $region4: #{_forward_impl.1} parent=1 // pred_region
      _
    $region5: #{_forward_impl.1} parent=1 // pred_fallthru
      _
    // Predicated region
    $region6: #{_forward_impl.1} parent=1 // pred_check
      _
    $region7: #{_forward_impl.1} parent=1 // pred_check_branch
      %15 = sbr.rel (0) target = $region9
    $region8: #{_forward_impl.1} parent=1 // pred_region
      %s17 = ssub.s32 2048, 2048
      %18 = vsyncadd [#allocation3], %s17
      %s19 = sshll.u32 [#allocation2], 4
      %s20 = int_to_ptr.vmem [resolvable:$true] %s19
      %25 = dma.hbm_to_vmem [thread:$0]  %s1, 2048, %s20, [#allocation3], 128, 128, 8
    $region9: #{_forward_impl.1} parent=1 // pred_fallthru
      _
    // Predicated region
    $region10: #{_forward_impl.1} parent=1 // pred_check
      _
    $region11: #{_forward_impl.1} parent=1 // pred_check_branch
      %27 = sbr.rel (0) target = $region13
    $region12: #{_forward_impl.1} parent=1 // pred_region
      _
    $region13: #{_forward_impl.1} parent=1 // pred_fallthru
      _
    // Predicated region
    $region14: #{_forward_impl.1} parent=1 // pred_check
      _
    $region15: #{_forward_impl.1} parent=1 // pred_check_branch
      %29 = sbr.rel (0) target = $region17
    $region16: #{_forward_impl.1} parent=1 // pred_region
      %s31 = ssub.s32 2048, 2048
      %32 = vsyncadd [#allocation5], %s31
      %s33 = sshll.u32 [#allocation4], 4
      %s34 = int_to_ptr.vmem [resolvable:$true] %s33
      %39 = dma.hbm_to_vmem [thread:$0]  %s3, 2048, %s34, [#allocation5], 128, 128, 8
    $region17: #{_forward_impl.1} parent=1 // pred_fallthru
      _
    // Predicated region
    $region18: #{_forward_impl.1} parent=1 // pred_check
      _
    $region19: #{_forward_impl.1} parent=1 // pred_check_branch
      %41 = sbr.rel (0) target = $region21
    $region20: #{_forward_impl.1} parent=1 // pred_region
      _
    $region21: #{_forward_impl.1} parent=1 // pred_fallthru
      _
    // Predicated region
    $region22: #{_forward_impl.1} parent=1 // pred_check
      _
    $region23: #{_forward_impl.1} parent=1 // pred_check_branch
      %43 = sbr.rel (0) target = $region25
    $region24: #{_forward_impl.1} parent=1 // pred_region
      %44 = dma.done [#allocation3], 2048
    $region25: #{_forward_impl.1} parent=1 // pred_fallthru
      _
    // Predicated region
    $region26: #{_forward_impl.1} parent=1 // pred_check
      _
    $region27: #{_forward_impl.1} parent=1 // pred_check_branch
      %46 = sbr.rel (0) target = $region29
    $region28: #{_forward_impl.1} parent=1 // pred_region
      %47 = dma.done [#allocation5], 2048
    $region29: #{_forward_impl.1} parent=1 // pred_fallthru
      _
    %v48 = vld [vmem:[%s2] sm:$0x1]
    %v49 = vld [vmem:[%s4] sm:$0x1]
    %v50 = vld [vmem:[%s0] sm:$0xff]
    %v51 = vld [vmem:[%s0 + $0x8] sm:$0xff]
    %v52 = vld [vmem:[#allocation2] sm:$0xff]
    %v53 = vld [vmem:[#allocation2 + $0x8] sm:$0xff]
    %v54 = vld [vmem:[#allocation2 + $0x10] sm:$0xff]
    %v55 = vld [vmem:[#allocation2 + $0x18] sm:$0xff]
    %v56 = vld [vmem:[#allocation2 + $0x20] sm:$0xff]
    %v57 = vld [vmem:[#allocation2 + $0x28] sm:$0xff]
    %v58 = vld [vmem:[#allocation2 + $0x30] sm:$0xff]
    %v59 = vld [vmem:[#allocation2 + $0x38] sm:$0xff]
    %v60 = vld [vmem:[#allocation2 + $0x40] sm:$0xff]
    %v61 = vld [vmem:[#allocation2 + $0x48] sm:$0xff]
    %v62 = vld [vmem:[#allocation2 + $0x50] sm:$0xff]
    %v63 = vld [vmem:[#allocation2 + $0x58] sm:$0xff]
    %v64 = vld [vmem:[#allocation2 + $0x60] sm:$0xff]
    %v65 = vld [vmem:[#allocation2 + $0x68] sm:$0xff]
    %v66 = vld [vmem:[#allocation2 + $0x70] sm:$0xff]
    %v67 = vld [vmem:[#allocation2 + $0x78] sm:$0xff]
    %v69 = vlaneseq
    %v70 = vshrl.u32 %v69, 7
    %v71 = vsub.s32 0, %v70
    %v72 = vrot.slane %v48, %v71
    %74 = vmatprep.subr.mxu0 0.0
    %75 = vmatpush1.msra.mxu0 %v52
    %76 = vmatprep.subr.mxu0 0.0
    %77 = vmatpush1.msra.mxu0 %v53
    %78 = vmatprep.subr.mxu0 0.0
    %79 = vmatpush1.msra.mxu0 %v54
    %80 = vmatprep.subr.mxu0 0.0
    %81 = vmatpush1.msra.mxu0 %v55
    %82 = vmatprep.subr.mxu0 0.0
    %83 = vmatpush1.msra.mxu0 %v56
    %84 = vmatprep.subr.mxu0 0.0
    %85 = vmatpush1.msra.mxu0 %v57
    %86 = vmatprep.subr.mxu0 0.0
    %87 = vmatpush1.msra.mxu0 %v58
    %88 = vmatprep.subr.mxu0 0.0
    %89 = vmatpush1.msra.mxu0 %v59
    %90 = vmatprep.subr.mxu0 0.0
    %91 = vmatpush1.msra.mxu0 %v60
    %92 = vmatprep.subr.mxu0 0.0
    %93 = vmatpush1.msra.mxu0 %v61
    %94 = vmatprep.subr.mxu0 0.0
    %95 = vmatpush1.msra.mxu0 %v62
    %96 = vmatprep.subr.mxu0 0.0
    %97 = vmatpush1.msra.mxu0 %v63
    %98 = vmatprep.subr.mxu0 0.0
    %99 = vmatpush1.msra.mxu0 %v64
    %100 = vmatprep.subr.mxu0 0.0
    %101 = vmatpush1.msra.mxu0 %v65
    %102 = vmatprep.subr.mxu0 0.0
    %103 = vmatpush1.msra.mxu0 %v66
    %104 = vmatprep.subr.mxu0 0.0
    %105 = vmatpush1.msra.mxu0 %v67
    %106 = vmatprep.subr.mxu0 0.0
    %107 = vmatpush1.msra.mxu0 0.0
    %108 = vmatprep.subr.mxu0 0.0
    %109 = vmatpush1.msra.mxu0 0.0
    %110 = vmatprep.subr.mxu0 0.0
    %111 = vmatpush1.msra.mxu0 0.0
    %112 = vmatprep.subr.mxu0 0.0
    %113 = vmatpush1.msra.mxu0 0.0
    %114 = vmatprep.subr.mxu0 0.0
    %115 = vmatpush1.msra.mxu0 0.0
    %116 = vmatprep.subr.mxu0 0.0
    %117 = vmatpush1.msra.mxu0 0.0
    %118 = vmatprep.subr.mxu0 0.0
    %119 = vmatpush1.msra.mxu0 0.0
    %120 = vmatprep.subr.mxu0 0.0
    %121 = vmatpush1.msra.mxu0 0.0
    %122 = vmatprep.subr.mxu0 0.0
    %123 = vmatpush1.msra.mxu0 0.0
    %124 = vmatprep.subr.mxu0 0.0
    %125 = vmatpush1.msra.mxu0 0.0
    %126 = vmatprep.subr.mxu0 0.0
    %127 = vmatpush1.msra.mxu0 0.0
    %128 = vmatprep.subr.mxu0 0.0
    %129 = vmatpush1.msra.mxu0 0.0
    %130 = vmatprep.subr.mxu0 0.0
    %131 = vmatpush1.msra.mxu0 0.0
    %132 = vmatprep.subr.mxu0 0.0
    %133 = vmatpush1.msra.mxu0 0.0
    %134 = vmatprep.subr.mxu0 0.0
    %135 = vmatpush1.msra.mxu0 0.0
    %136 = vmatprep.subr.mxu0 0.0
    %137 = vmatpush1.msra.mxu0 0.0
    %138 = vmatprep.mubr.f32.mxu0 0.0
    %139 = vmatmul.mubr.f32.gmra.mrb[0].mxu0 %v50
    %v140 = vpop.f32.mrb[0].mxu0
    %v141 = vadd.f32 %v72, %v140
    %v142 = vpop.f32.mrb[0].mxu0
    %143 = vmatprep.mubr.f32.mxu0 0.0
    %144 = vmatmul.mubr.f32.gmra.mrb[0].mxu0 %v51
    %v145 = vpop.f32.mrb[0].mxu0
    %v146 = vadd.f32 %v72, %v145
    %v147 = vpop.f32.mrb[0].mxu0
    %148 = vdwg.mxu0
    %v149 = vmax.f32 %v141, 0.0
    %v150 = vmax.f32 %v146, 0.0
    %v151 = vld [vmem:[#allocation4] sm:$0xff]
    %v152 = vld [vmem:[#allocation4 + $0x8] sm:$0xff]
    %v153 = vld [vmem:[#allocation4 + $0x10] sm:$0xff]
    %v154 = vld [vmem:[#allocation4 + $0x18] sm:$0xff]
    %v155 = vld [vmem:[#allocation4 + $0x20] sm:$0xff]
    %v156 = vld [vmem:[#allocation4 + $0x28] sm:$0xff]
    %v157 = vld [vmem:[#allocation4 + $0x30] sm:$0xff]
    %v158 = vld [vmem:[#allocation4 + $0x38] sm:$0xff]
    %v159 = vld [vmem:[#allocation4 + $0x40] sm:$0xff]
    %v160 = vld [vmem:[#allocation4 + $0x48] sm:$0xff]
    %v161 = vld [vmem:[#allocation4 + $0x50] sm:$0xff]
    %v162 = vld [vmem:[#allocation4 + $0x58] sm:$0xff]
    %v163 = vld [vmem:[#allocation4 + $0x60] sm:$0xff]
    %v164 = vld [vmem:[#allocation4 + $0x68] sm:$0xff]
    %v165 = vld [vmem:[#allocation4 + $0x70] sm:$0xff]
    %v166 = vld [vmem:[#allocation4 + $0x78] sm:$0xff]
    %v168 = vlaneseq
    %v169 = vshrl.u32 %v168, 7
    %v170 = vsub.s32 0, %v169
    %v171 = vrot.slane %v49, %v170
    %173 = vmatprep.subr.mxu0 0.0
    %174 = vmatpush1.msra.mxu0 %v151
    %175 = vmatprep.subr.mxu0 0.0
    %176 = vmatpush1.msra.mxu0 %v152
    %177 = vmatprep.subr.mxu0 0.0
    %178 = vmatpush1.msra.mxu0 %v153
    %179 = vmatprep.subr.mxu0 0.0
    %180 = vmatpush1.msra.mxu0 %v154
    %181 = vmatprep.subr.mxu0 0.0
    %182 = vmatpush1.msra.mxu0 %v155
    %183 = vmatprep.subr.mxu0 0.0
    %184 = vmatpush1.msra.mxu0 %v156
    %185 = vmatprep.subr.mxu0 0.0
    %186 = vmatpush1.msra.mxu0 %v157
    %187 = vmatprep.subr.mxu0 0.0
    %188 = vmatpush1.msra.mxu0 %v158
    %189 = vmatprep.subr.mxu0 0.0
    %190 = vmatpush1.msra.mxu0 %v159
    %191 = vmatprep.subr.mxu0 0.0
    %192 = vmatpush1.msra.mxu0 %v160
    %193 = vmatprep.subr.mxu0 0.0
    %194 = vmatpush1.msra.mxu0 %v161
    %195 = vmatprep.subr.mxu0 0.0
    %196 = vmatpush1.msra.mxu0 %v162
    %197 = vmatprep.subr.mxu0 0.0
    %198 = vmatpush1.msra.mxu0 %v163
    %199 = vmatprep.subr.mxu0 0.0
    %200 = vmatpush1.msra.mxu0 %v164
    %201 = vmatprep.subr.mxu0 0.0
    %202 = vmatpush1.msra.mxu0 %v165
    %203 = vmatprep.subr.mxu0 0.0
    %204 = vmatpush1.msra.mxu0 %v166
    %205 = vmatprep.subr.mxu0 0.0
    %206 = vmatpush1.msra.mxu0 0.0
    %207 = vmatprep.subr.mxu0 0.0
    %208 = vmatpush1.msra.mxu0 0.0
    %209 = vmatprep.subr.mxu0 0.0
    %210 = vmatpush1.msra.mxu0 0.0
    %211 = vmatprep.subr.mxu0 0.0
    %212 = vmatpush1.msra.mxu0 0.0
    %213 = vmatprep.subr.mxu0 0.0
    %214 = vmatpush1.msra.mxu0 0.0
    %215 = vmatprep.subr.mxu0 0.0
    %216 = vmatpush1.msra.mxu0 0.0
    %217 = vmatprep.subr.mxu0 0.0
    %218 = vmatpush1.msra.mxu0 0.0
    %219 = vmatprep.subr.mxu0 0.0
    %220 = vmatpush1.msra.mxu0 0.0
    %221 = vmatprep.subr.mxu0 0.0
    %222 = vmatpush1.msra.mxu0 0.0
    %223 = vmatprep.subr.mxu0 0.0
    %224 = vmatpush1.msra.mxu0 0.0
    %225 = vmatprep.subr.mxu0 0.0
    %226 = vmatpush1.msra.mxu0 0.0
    %227 = vmatprep.subr.mxu0 0.0
    %228 = vmatpush1.msra.mxu0 0.0
    %229 = vmatprep.subr.mxu0 0.0
    %230 = vmatpush1.msra.mxu0 0.0
    %231 = vmatprep.subr.mxu0 0.0
    %232 = vmatpush1.msra.mxu0 0.0
    %233 = vmatprep.subr.mxu0 0.0
    %234 = vmatpush1.msra.mxu0 0.0
    %235 = vmatprep.subr.mxu0 0.0
    %236 = vmatpush1.msra.mxu0 0.0
    %237 = vmatprep.mubr.f32.mxu0 0.0
    %238 = vmatmul.mubr.f32.gmra.mrb[0].mxu0 %v149
    %v239 = vpop.f32.mrb[0].mxu0
    %v240 = vadd.f32 %v171, %v239
    %v241 = vpop.f32.mrb[0].mxu0
    %242 = vmatprep.mubr.f32.mxu0 0.0
    %243 = vmatmul.mubr.f32.gmra.mrb[0].mxu0 %v150
    %v244 = vpop.f32.mrb[0].mxu0
    %v245 = vadd.f32 %v171, %v244
    %v246 = vpop.f32.mrb[0].mxu0
    %247 = vdwg.mxu0
    %248 = vst [vmem:[%s5] sm:$0xff] %v240
    %249 = vst [vmem:[%s5 + $0x8] sm:$0xff] %v245
    // Predicated region
    $region30: #{_forward_impl.1} parent=1 // pred_check
      _
    $region31: #{_forward_impl.1} parent=1 // pred_check_branch
      %251 = sbr.rel (0) target = $region33
    $region32: #{_forward_impl.1} parent=1 // pred_region
      _
    $region33: #{_forward_impl.1} parent=1 // pred_fallthru
      _
    // Predicated region
    $region34: #{_forward_impl.1} parent=1 // pred_check
      _
    $region35: #{_forward_impl.1} parent=1 // pred_check_branch
      %253 = sbr.rel (0) target = $region37
    $region36: #{_forward_impl.1} parent=1 // pred_region
      _
    $region37: #{_forward_impl.1} parent=1 // pred_fallthru
      _
    %254 = vsyncpa [#allocation3], 1
    %255 = vsyncpa [#allocation5], 1

</llo_original>
